<compile_context>
chip_gen: v5e
topology: v5e:2x2
jax: 0.10.0
libtpu: 0.0.40
codegen_flags: <defaults>
</compile_context>

<pallas_src>
import functools

import jax
import jax.numpy as jnp
from jax.experimental import pallas as pl
from jax.experimental.pallas import tpu as pltpu


def _round_up(x: int, m: int) -> int:
    return (x + m - 1) // m * m


def _choose_ts(s: int, in_bytes_per_row: int, ts_cap: int,
               budget_bytes: int = 12 << 20) -> int:
    """Sublane-chunk size: multiple of 8 (or the full extent) within budget."""
    max_rows = max(8, budget_bytes // max(in_bytes_per_row, 1))
    cap = min(ts_cap, max_rows)
    if s <= cap:
        return s                      # full-extent block (any size) is legal
    return max(8, (cap // 8) * 8)     # otherwise keep it a multiple of 8


def _focal_tile(x_ref, t_ref, *, gamma: float, alpha0: float, alpha1: float,
                ts: int, hw: int, needs_mask: bool):
    """Per-observation focal loss for one dense tile.

    x_ref: (C, TS, 128) logits, t_ref: (TS, 128) int targets.
    Returns a (TS, 128) f32 loss tile (padded/ragged columns zeroed).
    """
    t = t_ref[...]
    c = x_ref.shape[0]

    if c == 2:
        # Binary specialization: logpt = -softplus(x_other - x_target).
        x0 = x_ref[0].astype(jnp.float32)            # (TS, 128) dense slab
        x1 = x_ref[1].astype(jnp.float32)
        is0 = t == 0
        xt = jnp.where(is0, x0, x1)
        xo = jnp.where(is0, x1, x0)
        d = xo - xt
        e = jnp.exp(-jnp.abs(d))                      # reused for logpt AND pt
        logpt = -(jnp.maximum(d, 0.0) + jnp.log(1.0 + e))
        # pt = exp(logpt) = exp(-max(d,0)) / (1+e)  -> one exp saved.
        pt = jnp.where(d >= 0.0, e, 1.0) / (1.0 + e)
    else:
        # Generic C: log_softmax over the (leading) class axis — C-1
        # elementwise maxes/adds over dense (TS,128) slabs, plus a one-hot
        # select gather at the target class.
        x0 = x_ref[0].astype(jnp.float32)
        m = x0
        for k in range(1, c):
            m = jnp.maximum(m, x_ref[k].astype(jnp.float32))
        ssum = jnp.exp(x0 - m)
        xt = jnp.where(t == 0, x0, 0.0)
        for k in range(1, c):
            xk = x_ref[k].astype(jnp.float32)
            ssum = ssum + jnp.exp(xk - m)
            xt = jnp.where(t == k, xk, xt)
        logpt = (xt - m) - jnp.log(ssum)
        pt = jnp.exp(logpt)

    # TODO(synk): the module's alpha table has exactly two entries
    # [alpha, 1-alpha]; for C>2 every class != 0 gets 1-alpha (matching what a
    # clamped gather on the 2-entry table would do).
    at = jnp.where(t == 0, jnp.float32(alpha0), jnp.float32(alpha1))
    logpt_a = logpt * at

    one_m_pt = 1.0 - pt
    if gamma == 0.0:
        loss = -logpt_a                               # (1-pt)**0 == 1
    elif float(gamma).is_integer() and 0.0 < gamma <= 4.0:
        focal = one_m_pt                              # repeated multiply, no pow
        for _ in range(int(gamma) - 1):
            focal = focal * one_m_pt
        loss = -(focal * logpt_a)
    else:
        # (1-pt)**gamma via exp(gamma*log(1-pt)); guard 1-pt == 0.
        focal = jnp.where(
            one_m_pt > 0.0,
            jnp.exp(jnp.float32(gamma) * jnp.log(jnp.maximum(one_m_pt, 1e-38))),
            0.0)
        loss = -(focal * logpt_a)

    if needs_mask:
        # Zero padded / out-of-bounds observation columns (select, not
        # multiply, so garbage logits in the ragged tail cannot leak NaN/inf).
        j = pl.program_id(1)
        row = jax.lax.broadcasted_iota(jnp.int32, (ts, 128), 0)
        lane = jax.lax.broadcasted_iota(jnp.int32, (ts, 128), 1)
        obs = (j * ts + row) * 128 + lane
        loss = jnp.where(obs < hw, loss, 0.0)
    return loss


def _focal_rows_kernel(x_ref, t_ref, loss_ref, **kw):
    """no_agg path: dense (TS, 128) store of the per-observation loss."""
    loss_ref[...] = _focal_tile(x_ref, t_ref, **kw)


def _focal_partial_kernel(x_ref, t_ref, part_ref, **kw):
    """Aggregate path: one tiny (1, 128) partial sum per (batch, chunk).

    Per-chunk partials keep both grid axes 'parallel' (v7x can split the chunk
    axis across its two TensorCores even for B=1-2); the wrapper sums them.
    """
    loss = _focal_tile(x_ref, t_ref, **kw)
    part_ref[...] = jnp.sum(loss, axis=0, keepdims=True)


def focal_loss(logits, target, *, gamma: float = 0.0, alpha: float = 0.25,
               size_average: bool = True, no_agg: bool = False,
               ts_cap: int = 4096, vmem_limit_bytes: int = 48 << 20):
    """JAX/Pallas equivalent of FocalLoss.forward."""
    # --- flatten to (B, C, HW), preserving PyTorch's observation order ---
    if logits.ndim > 2:
        b, c = logits.shape[0], logits.shape[1]
        x = logits.reshape(b, c, -1)                 # NCHW -> (B, C, H*W)
    else:
        n0, c = logits.shape
        x = logits.T.reshape(1, c, n0)               # rare 2-D path
        b = 1
    hw = x.shape[-1]
    tgt = target.reshape(b, hw)
    if not jnp.issubdtype(tgt.dtype, jnp.integer):
        tgt = tgt.astype(jnp.int32)
    # TODO(synk): callers holding int8 targets can pass them through unchanged
    # to cut ~25% of read traffic for C==2 (needs TS aligned to int8 tiling).

    # --- pad observations to a multiple of 128 lanes only, then fold onto
    #     (sublane, lane): x -> (B, C, S, 128), targets -> (B, S, 128) ---
    hw128 = _round_up(hw, 128)
    if hw128 != hw:
        x = jnp.pad(x, ((0, 0), (0, 0), (0, hw128 - hw)))
        tgt = jnp.pad(tgt, ((0, 0), (0, hw128 - hw)))
    s = hw128 // 128
    x = x.reshape(b, c, s, 128)
    tgt = tgt.reshape(b, s, 128)

    in_bytes_per_row = 128 * (c * x.dtype.itemsize + tgt.dtype.itemsize + 4)
    ts = _choose_ts(s, in_bytes_per_row, ts_cap)
    n_chunks = pl.cdiv(s, ts)
    needs_mask = (n_chunks * ts * 128) != hw         # padding and/or ragged tail

    kw = dict(gamma=float(gamma), alpha0=float(alpha), alpha1=float(1.0 - alpha),
              ts=ts, hw=hw, needs_mask=needs_mask)

    in_specs = [
        pl.BlockSpec((None, c, ts, 128), lambda bb, jj: (bb, 0, jj, 0)),   # logits
        pl.BlockSpec((None, ts, 128), lambda bb, jj: (bb, jj, 0)),          # targets
    ]
    cp = pltpu.CompilerParams(
        dimension_semantics=("parallel", "parallel"),
        vmem_limit_bytes=vmem_limit_bytes,
    )

    if no_agg:
        per_obs = pl.pallas_call(
            functools.partial(_focal_rows_kernel, **kw),
            out_shape=jax.ShapeDtypeStruct((b, s, 128), jnp.float32),
            grid=(b, n_chunks),
            in_specs=in_specs,
            out_specs=pl.BlockSpec((None, ts, 128), lambda bb, jj: (bb, jj, 0)),
            compiler_params=cp,
        )(x, tgt)
        per_obs = per_obs.reshape(b, hw128)
        if hw128 != hw:
            per_obs = per_obs[:, :hw]                # only when hw % 128 != 0
        return per_obs.reshape(-1)                   # PyTorch flatten order

    partials = pl.pallas_call(
        functools.partial(_focal_partial_kernel, **kw),
        out_shape=jax.ShapeDtypeStruct((b, n_chunks, 1, 128), jnp.float32),
        grid=(b, n_chunks),
        in_specs=in_specs,
        out_specs=pl.BlockSpec((None, None, 1, 128), lambda bb, jj: (bb, jj, 0, 0)),
        compiler_params=cp,
    )(x, tgt)
    total = jnp.sum(partials)
    if size_average:
        return total / jnp.float32(b * hw)
    return total


def _reference(logits, target, *, gamma, alpha, size_average, no_agg):
    """Pure-JAX reference mirroring the PyTorch module."""
    if logits.ndim > 2:
        b, c = logits.shape[0], logits.shape[1]
        x = jnp.transpose(logits.reshape(b, c, -1), (0, 2, 1)).reshape(-1, c)
    else:
        x = logits
    t = target.reshape(-1).astype(jnp.int32)
    logp = jax.nn.log_softmax(x.astype(jnp.float32), axis=1)
    logpt = jnp.take_along_axis(logp, t[:, None], axis=1)[:, 0]
    pt = jnp.exp(logpt)
    # 2-entry alpha table of the module: class 0 -> alpha, otherwise 1-alpha.
    at = jnp.where(t == 0, jnp.float32(alpha), jnp.float32(1.0 - alpha))
    logpt = logpt * at
    loss = -1.0 * (1.0 - pt) ** gamma * logpt
    if no_agg:
        return loss
    return loss.mean() if size_average else loss.sum()


if __name__ == "__main__":
    key = jax.random.PRNGKey(0)
    ks = jax.random.split(key, 8)
    gamma, alpha = 2.0, 0.25

    # (1) Binary NCHW logits: mean / sum / per-observation paths.
    B, C, H, W = 2, 2, 16, 16
    logits = jax.random.normal(ks[0], (B, C, H, W), dtype=jnp.float32)
    target = jax.random.randint(ks[1], (B, H, W), 0, C, dtype=jnp.int32)

    out = jax.block_until_ready(
        focal_loss(logits, target, gamma=gamma, alpha=alpha, size_average=True))
    ref = _reference(logits, target, gamma=gamma, alpha=alpha,
                     size_average=True, no_agg=False)
    assert jnp.allclose(out, ref, rtol=1e-5, atol=1e-6), (out, ref)

    out_sum = jax.block_until_ready(
        focal_loss(logits, target, gamma=gamma, alpha=alpha, size_average=False))
    ref_sum = _reference(logits, target, gamma=gamma, alpha=alpha,
                         size_average=False, no_agg=False)
    assert jnp.allclose(out_sum, ref_sum, rtol=1e-5, atol=1e-5), (out_sum, ref_sum)

    out_rows = jax.block_until_ready(
        focal_loss(logits, target, gamma=gamma, alpha=alpha, no_agg=True))
    ref_rows = _reference(logits, target, gamma=gamma, alpha=alpha,
                          size_average=True, no_agg=True)
    assert jnp.allclose(out_rows, ref_rows, rtol=1e-5, atol=1e-6)

    # (2) Ragged spatial size (lane padding + in-kernel mask), gamma=0 path.
    H2, W2 = 10, 10
    logits2 = jax.random.normal(ks[2], (B, C, H2, W2), dtype=jnp.float32)
    target2 = jax.random.randint(ks[3], (B, H2, W2), 0, C, dtype=jnp.int32)
    out2 = jax.block_until_ready(
        focal_loss(logits2, target2, gamma=0.0, alpha=alpha, size_average=True))
    ref2 = _reference(logits2, target2, gamma=0.0, alpha=alpha,
                      size_average=True, no_agg=False)
    assert jnp.allclose(out2, ref2, rtol=1e-5, atol=1e-6), (out2, ref2)
    out2_rows = jax.block_until_ready(
        focal_loss(logits2, target2, gamma=0.0, alpha=alpha, no_agg=True))
    ref2_rows = _reference(logits2, target2, gamma=0.0, alpha=alpha,
                           size_average=True, no_agg=True)
    assert jnp.allclose(out2_rows, ref2_rows, rtol=1e-5, atol=1e-6)

    # (3) Multi-chunk grid (small ts_cap forces chunking) + non-integer gamma.
    H3, W3 = 64, 64
    logits3 = jax.random.normal(ks[4], (B, C, H3, W3), dtype=jnp.float32)
    target3 = jax.random.randint(ks[5], (B, H3, W3), 0, C, dtype=jnp.int32)
    out3 = jax.block_until_ready(
        focal_loss(logits3, target3, gamma=1.5, alpha=alpha,
                   size_average=False, ts_cap=8))
    ref3 = _reference(logits3, target3, gamma=1.5, alpha=alpha,
                      size_average=False, no_agg=False)
    assert jnp.allclose(out3, ref3, rtol=1e-5, atol=1e-4), (out3, ref3)

    # (4) Generic C>2 path (C=4), small ragged spatial size, mean aggregation.
    C4, H4, W4 = 4, 8, 8
    logits4 = jax.random.normal(ks[6], (B, C4, H4, W4), dtype=jnp.float32)
    target4 = jax.random.randint(ks[7], (B, H4, W4), 0, C4, dtype=jnp.int32)
    out4 = jax.block_until_ready(
        focal_loss(logits4, target4, gamma=gamma, alpha=alpha, size_average=True))
    ref4 = _reference(logits4, target4, gamma=gamma, alpha=alpha,
                      size_average=True, no_agg=False)
    assert jnp.allclose(out4, ref4, rtol=1e-5, atol=1e-6), (out4, ref4)

    print("KERNEL_OK")
</pallas_src>

<mosaic_0001>
module attributes {stable_mosaic.version = 11 : i64} {
  func.func @_focal_partial_kernel(%arg0: i32, %arg1: i32, %arg2: memref<1x2x2x128xf32, #tpu.memory_space<vmem>>, %arg3: memref<1x2x128xi32, #tpu.memory_space<vmem>>, %arg4: memref<1x1x1x128xf32, #tpu.memory_space<vmem>>) attributes {dimension_semantics = [#tpu.dimension_semantics<parallel>, #tpu.dimension_semantics<parallel>], iteration_bounds = array<i64: 2, 1>, scalar_prefetch = 0 : i64, scratch_operands = 0 : i64, tpu.core_type = #tpu.core_type<tc>, window_params = [{transform_indices = @transform_0, window_bounds = array<i64: 1, 2, 2, 128>}, {transform_indices = @transform_1, window_bounds = array<i64: 1, 2, 128>}, {transform_indices = @transform_2, window_bounds = array<i64: 1, 1, 1, 128>}]} {
    %c0 = arith.constant 0 : index
    %c0_0 = arith.constant 0 : index
    %c0_1 = arith.constant 0 : index
    %0 = vector.load %arg3[%c0, %c0_0, %c0_1] : memref<1x2x128xi32, #tpu.memory_space<vmem>>, vector<1x2x128xi32>
    %1 = vector.shape_cast %0 : vector<1x2x128xi32> to vector<2x128xi32>
    %c0_2 = arith.constant 0 : index
    %c0_3 = arith.constant 0 : index
    %c0_4 = arith.constant 0 : index
    %c0_5 = arith.constant 0 : index
    %2 = vector.load %arg2[%c0_2, %c0_3, %c0_4, %c0_5] : memref<1x2x2x128xf32, #tpu.memory_space<vmem>>, vector<1x1x2x128xf32>
    %3 = vector.shape_cast %2 : vector<1x1x2x128xf32> to vector<2x128xf32>
    %c0_6 = arith.constant 0 : index
    %c1 = arith.constant 1 : index
    %c0_7 = arith.constant 0 : index
    %c0_8 = arith.constant 0 : index
    %4 = vector.load %arg2[%c0_6, %c1, %c0_7, %c0_8] : memref<1x2x2x128xf32, #tpu.memory_space<vmem>>, vector<1x1x2x128xf32>
    %5 = vector.shape_cast %4 : vector<1x1x2x128xf32> to vector<2x128xf32>
    %c0_i32 = arith.constant 0 : i32
    %6 = vector.broadcast %c0_i32 : i32 to vector<2x128xi32>
    %7 = arith.cmpi eq, %1, %6 : vector<2x128xi32>
    %8 = arith.select %7, %3, %5 : vector<2x128xi1>, vector<2x128xf32>
    %9 = arith.select %7, %5, %3 : vector<2x128xi1>, vector<2x128xf32>
    %10 = arith.subf %9, %8 : vector<2x128xf32>
    %11 = math.absf %10 : vector<2x128xf32>
    %cst = arith.constant 0.000000e+00 : f32
    %12 = vector.broadcast %cst : f32 to vector<2x128xf32>
    %13 = arith.subf %12, %11 : vector<2x128xf32>
    %14 = math.exp %13 : vector<2x128xf32>
    %cst_9 = arith.constant 0.000000e+00 : f32
    %15 = vector.broadcast %cst_9 : f32 to vector<2x128xf32>
    %16 = arith.maximumf %10, %15 : vector<2x128xf32>
    %cst_10 = arith.constant 1.000000e+00 : f32
    %17 = vector.broadcast %cst_10 : f32 to vector<2x128xf32>
    %18 = arith.addf %17, %14 : vector<2x128xf32>
    %19 = math.log %18 : vector<2x128xf32>
    %20 = arith.addf %16, %19 : vector<2x128xf32>
    %cst_11 = arith.constant 0.000000e+00 : f32
    %21 = vector.broadcast %cst_11 : f32 to vector<2x128xf32>
    %22 = arith.subf %21, %20 : vector<2x128xf32>
    %cst_12 = arith.constant 0.000000e+00 : f32
    %23 = vector.broadcast %cst_12 : f32 to vector<2x128xf32>
    %24 = arith.cmpf oge, %10, %23 : vector<2x128xf32>
    %cst_13 = arith.constant 1.000000e+00 : f32
    %25 = vector.broadcast %cst_13 : f32 to vector<2x128xf32>
    %26 = arith.select %24, %14, %25 : vector<2x128xi1>, vector<2x128xf32>
    %cst_14 = arith.constant 1.000000e+00 : f32
    %27 = vector.broadcast %cst_14 : f32 to vector<2x128xf32>
    %28 = arith.addf %27, %14 : vector<2x128xf32>
    %29 = arith.divf %26, %28 : vector<2x128xf32>
    %c0_i32_15 = arith.constant 0 : i32
    %30 = vector.broadcast %c0_i32_15 : i32 to vector<2x128xi32>
    %31 = arith.cmpi eq, %1, %30 : vector<2x128xi32>
    %cst_16 = arith.constant 2.500000e-01 : f32
    %cst_17 = arith.constant 7.500000e-01 : f32
    %32 = vector.broadcast %cst_16 : f32 to vector<2x128xf32>
    %33 = vector.broadcast %cst_17 : f32 to vector<2x128xf32>
    %34 = arith.select %31, %32, %33 : vector<2x128xi1>, vector<2x128xf32>
    %35 = arith.mulf %22, %34 : vector<2x128xf32>
    %cst_18 = arith.constant 1.000000e+00 : f32
    %36 = vector.broadcast %cst_18 : f32 to vector<2x128xf32>
    %37 = arith.subf %36, %29 : vector<2x128xf32>
    %38 = arith.mulf %37, %37 : vector<2x128xf32>
    %39 = arith.mulf %38, %35 : vector<2x128xf32>
    %cst_19 = arith.constant 0.000000e+00 : f32
    %40 = vector.broadcast %cst_19 : f32 to vector<2x128xf32>
    %41 = arith.subf %40, %39 : vector<2x128xf32>
    %cst_20 = arith.constant dense<0.000000e+00> : vector<128xf32>
    %42 = vector.multi_reduction <add>, %41, %cst_20 [0] : vector<2x128xf32> to vector<128xf32>
    %43 = vector.shape_cast %42 : vector<128xf32> to vector<1x128xf32>
    %c0_21 = arith.constant 0 : index
    %c0_22 = arith.constant 0 : index
    %c0_23 = arith.constant 0 : index
    %c0_24 = arith.constant 0 : index
    %44 = vector.load %arg4[%c0_21, %c0_22, %c0_23, %c0_24] : memref<1x1x1x128xf32, #tpu.memory_space<vmem>>, vector<1x1x1x128xf32>
    %45 = vector.shape_cast %44 : vector<1x1x1x128xf32> to vector<1x128xf32>
    %46 = vector.shape_cast %43 : vector<1x128xf32> to vector<1x1x1x128xf32>
    tpu.vector_store %arg4[%c0_21, %c0_22, %c0_23, %c0_24], %46 {strides = array<i32>} : memref<1x1x1x128xf32, #tpu.memory_space<vmem>>, vector<1x1x1x128xf32>,
    return
  }
  func.func @transform_0(%arg0: i32, %arg1: i32) -> (i32, i32, i32, i32) {
    %c0_i32 = arith.constant 0 : i32
    %c0_i32_0 = arith.constant 0 : i32
    %c0_i32_1 = arith.constant 0 : i32
    return %arg0, %c0_i32, %arg1, %c0_i32_0 : i32, i32, i32, i32
  }
  func.func @transform_1(%arg0: i32, %arg1: i32) -> (i32, i32, i32) {
    %c0_i32 = arith.constant 0 : i32
    %c0_i32_0 = arith.constant 0 : i32
    return %arg0, %arg1, %c0_i32 : i32, i32, i32
  }
  func.func @transform_2(%arg0: i32, %arg1: i32) -> (i32, i32, i32, i32) {
    %c0_i32 = arith.constant 0 : i32
    %c0_i32_0 = arith.constant 0 : i32
    %c0_i32_1 = arith.constant 0 : i32
    return %arg0, %arg1, %c0_i32, %c0_i32_0 : i32, i32, i32, i32
  }
}

</mosaic_0001>

<llo_original>
// kernel: tpu_custom_call.1
$region0: #{tpu_custom_call.1}
  #allocation0 [shape = 'u32[]', space=smem, size = 0x4, offset = 0x4, fixed_abs, tag = 'smem constant byte address 0x4 - core index']
  #allocation1 [shape = 'u32[72,128]{1,0:T(1,128)}', space=vmem, size = 0x9000, scoped, tag = 'internal scratch']
  %s0 = inlined_call_operand.hbm [shape: f32[2,2,2,128], index: 0, kind: input, shape index: {}]
  %s1 = inlined_call_operand.hbm [shape: s32[2,2,128], index: 1, kind: input, shape index: {}]
  %s2 = inlined_call_operand.hbm [shape: f32[2,1,1,128], index: 2, kind: output, shape index: {}]
  %s3 = sld [smem:[#allocation0]]
  $region49: #{tpu_custom_call.1} parent=0
    _
  %s5 = ssub.s32 1, %s3
  %s6 = scalar_select 0, %s5, %s3
  $region1: #{tpu_custom_call.1} parent=0
    #allocation2 [shape = 'u8[4096]{0}', space=vmem, size = 0x1000, scoped, tag = 'input window, operand 0']
    #allocation3 [shape = 's32[2]{0}', space=sflag, size = 0x8, scoped, tag = 'scoped memory for tpu_custom_call.1']
    #allocation4 [shape = 's32[2]{0}', space=sflag, size = 0x8, scoped, tag = 'scoped memory for tpu_custom_call.1']
    #allocation5 [shape = 'u8[2048]{0}', space=vmem, size = 0x800, scoped, tag = 'input window, operand 1']
    #allocation6 [shape = 's32[2]{0}', space=sflag, size = 0x8, scoped, tag = 'scoped memory for tpu_custom_call.1']
    #allocation7 [shape = 'u8[1024]{0}', space=vmem, size = 0x400, scoped, tag = 'output window, operand 0']
    %7 = vsyncpa [#allocation3], 0
    %s8 = scalar_lea.sflag [#allocation3], 1
    %9 = vsyncpa %s8, 0
    %10 = vsyncpa [#allocation6], 0
    %s11 = scalar_lea.sflag [#allocation6], 1
    %12 = vsyncpa %s11, 0
    %13 = vsyncpa [#allocation4], 0
    %s14 = scalar_lea.sflag [#allocation4], 1
    %15 = vsyncpa %s14, 0
    loop: start=0, step=1, limit=4
    $region2: #{tpu_custom_call.1} parent=1 // loop_pre_header
      _
    $region3: #{tpu_custom_call.1} parent=1 // loop_header
      %s17 = sphi 0, %s21
      %p18 = scmp.ge.s32.totalorder %s17, 4
      %s24 = sphi 0, %s36
      %s25 = sphi 0, %s32
      %s26 = sphi 0, %s24
      %s27 = sphi 0, %s25
      %s28 = sphi 0, %s26
      %s29 = sphi 0, %s27
      %s41 = sphi 0, %s43
      %s44 = sphi 0, %s41
      %s45 = sphi 0, %s44
      %s61 = sphi 0, %s45
      %s69 = sphi 0, %s71
      %s72 = sphi 0, %s69
      %s73 = sphi 0, %s72
      %s89 = sphi 0, %s73
      %s97 = sphi 0, %s99
      %s100 = sphi 0, %s97
      %s101 = sphi 0, %s100
      %s117 = sphi 0, %s101
    $region4: #{tpu_custom_call.1} parent=1 // loop_header_branch
      %20 = sbr.rel (%p18) target = $region8
    $region5: #{tpu_custom_call.1} parent=1 // loop_body
      %s22 = ssub.s32 %s17, 1
      %s23 = ssub.s32 %s17, 2
      %s30 = sadd.s32 1, %s25
      %p31 = scmp.ge.s32.totalorder %s30, 1
      %s32 = scalar_select %p31, 0, %s30
      %s33 = sadd.s32 1, %s24
      %s34 = scalar_select %p31, %s33, %s24
      %p35 = scmp.ge.s32.totalorder %s34, 2
      %s36 = scalar_select %p35, 0, %s34
      %s37 = ssub.s32 %s24, %s36
      %s38 = ssub.s32 %s25, %s32
      %s39 = sor.u32 %s37, %s38
      %p40 = scmp.eq.s32.totalorder %s39, 0
      %s42 = sadd.s32 %s41, 1
      %s43 = scalar_select %p40, %s41, %s42
      %p46 = pneg %p40
      %p47 = scmp.eq.s32.totalorder %s17, 1
      %p48 = por %p46, %p47
      %p49 = scmp.ne.s32.totalorder %s41, %s44
      %p50 = scmp.eq.s32.totalorder %s17, 0
      %p51 = por %p49, %p50
      %p52 = scmp.ne.s32.totalorder %s41, %s44
      %p53 = scmp.eq.s32.totalorder %s22, 1
      %p54 = por %p52, %p53
      %p55 = scmp.ne.s32.totalorder %s44, %s45
      %p56 = scmp.eq.s32.totalorder %s22, 0
      %p57 = por %p55, %p56
      %p58 = scmp.ne.s32.totalorder %s44, %s45
      %p59 = scmp.eq.s32.totalorder %s23, 1
      %p60 = por %p58, %p59
      %p62 = scmp.ne.s32.totalorder %s45, %s61
      %p63 = scmp.eq.s32.totalorder %s23, 0
      %p64 = por %p62, %p63
      %s65 = ssub.s32 %s24, %s36
      %s66 = ssub.s32 %s25, %s32
      %s67 = sor.u32 %s65, %s66
      %p68 = scmp.eq.s32.totalorder %s67, 0
      %s70 = sadd.s32 %s69, 1
      %s71 = scalar_select %p68, %s69, %s70
      %p74 = pneg %p68
      %p75 = scmp.eq.s32.totalorder %s17, 1
      %p76 = por %p74, %p75
      %p77 = scmp.ne.s32.totalorder %s69, %s72
      %p78 = scmp.eq.s32.totalorder %s17, 0
      %p79 = por %p77, %p78
      %p80 = scmp.ne.s32.totalorder %s69, %s72
      %p81 = scmp.eq.s32.totalorder %s22, 1
      %p82 = por %p80, %p81
      %p83 = scmp.ne.s32.totalorder %s72, %s73
      %p84 = scmp.eq.s32.totalorder %s22, 0
      %p85 = por %p83, %p84
      %p86 = scmp.ne.s32.totalorder %s72, %s73
      %p87 = scmp.eq.s32.totalorder %s23, 1
      %p88 = por %p86, %p87
      %p90 = scmp.ne.s32.totalorder %s73, %s89
      %p91 = scmp.eq.s32.totalorder %s23, 0
      %p92 = por %p90, %p91
      %s93 = ssub.s32 %s24, %s36
      %s94 = ssub.s32 %s25, %s32
      %s95 = sor.u32 %s93, %s94
      %p96 = scmp.eq.s32.totalorder %s95, 0
      %s98 = sadd.s32 %s97, 1
      %s99 = scalar_select %p96, %s97, %s98
      %p102 = pneg %p96
      %p103 = scmp.eq.s32.totalorder %s17, 1
      %p104 = por %p102, %p103
      %p105 = scmp.ne.s32.totalorder %s97, %s100
      %p106 = scmp.eq.s32.totalorder %s17, 0
      %p107 = por %p105, %p106
      %p108 = scmp.ne.s32.totalorder %s97, %s100
      %p109 = scmp.eq.s32.totalorder %s22, 1
      %p110 = por %p108, %p109
      %p111 = scmp.ne.s32.totalorder %s100, %s101
      %p112 = scmp.eq.s32.totalorder %s22, 0
      %p113 = por %p111, %p112
      %p114 = scmp.ne.s32.totalorder %s100, %s101
      %p115 = scmp.eq.s32.totalorder %s23, 1
      %p116 = por %p114, %p115
      %p118 = scmp.ne.s32.totalorder %s101, %s117
      %p119 = scmp.eq.s32.totalorder %s23, 0
      %p120 = por %p118, %p119
      %p121 = scmp.le.s32.totalorder 1, %s17
      %p122 = scmp.lt.s32.totalorder %s17, 3
      %p123 = pnand %p121, %p122
      %p124 = pneg %p123
      // Predicated region
      $region9: #{tpu_custom_call.1} parent=5 // pred_check
        _
      $region10: #{tpu_custom_call.1} parent=5 // pred_check_branch
        %126 = sbr.rel (%p123) target = $region12
      $region11: #{tpu_custom_call.1} parent=5 // pred_region
        %s127 = ssub.s32 %s17, 1
      $region12: #{tpu_custom_call.1} parent=5 // pred_fallthru
        _
      %p128 = scmp.lt.s32.totalorder %s17, 2
      // Predicated region
      $region13: #{tpu_custom_call.1} parent=5 // pred_check
        %p129 = pneg %p128
      $region14: #{tpu_custom_call.1} parent=5 // pred_check_branch
        %131 = sbr.rel (%p129) target = $region16
      $region15: #{tpu_custom_call.1} parent=5 // pred_region
        // Predicated region
        $region17: #{tpu_custom_call.1} parent=15 // pred_check
          %p132 = pneg %p51
        $region18: #{tpu_custom_call.1} parent=15 // pred_check_branch
          %134 = sbr.rel (%p132) target = $region20
        $region19: #{tpu_custom_call.1} parent=15 // pred_region
          %s135 = sand.u32 %s41, 1
          %s136 = scalar_lea.sflag [#allocation3], %s135
          %s137 = sand.u32 %s41, 1
          %s138 = smul.addr %s137, 4
          %s139 = scalar_lea.vmem [#allocation2], %s138
          %141 = vsyncadd %s136, 0
          %s142 = smul.addr %s24, 2
          %s143 = sadd.s32 %s25, %s142
          %s144 = smul.addr %s143, 2
          %s145 = scalar_lea.hbm %s0, %s144
          %s146 = sshll.u32 %s145, 4
          %s147 = int_to_ptr.hbm [resolvable:$true] %s146
          %s148 = sshll.u32 %s139, 4
          %s149 = int_to_ptr.vmem [resolvable:$true] %s148
          %154 = dma.hbm_to_vmem [thread:$0]  %s147, 64, %s149, %s136, 32, 32, 2
        $region20: #{tpu_custom_call.1} parent=15 // pred_fallthru
          _
        // Predicated region
        $region21: #{tpu_custom_call.1} parent=15 // pred_check
          %p155 = pneg %p79
        $region22: #{tpu_custom_call.1} parent=15 // pred_check_branch
          %157 = sbr.rel (%p155) target = $region24
        $region23: #{tpu_custom_call.1} parent=15 // pred_region
          %s158 = sand.u32 %s69, 1
          %s159 = scalar_lea.sflag [#allocation6], %s158
          %s160 = sand.u32 %s69, 1
          %s161 = smul.addr %s160, 2
          %s162 = scalar_lea.vmem [#allocation5], %s161
          %164 = vsyncadd %s159, 0
          %s165 = sadd.s32 %s25, %s24
          %s166 = smul.addr %s165, 2
          %s167 = scalar_lea.hbm %s1, %s166
          %s169 = sshll.u32 %s167, 4
          %s170 = int_to_ptr.hbm [resolvable:$true] %s169
          %s171 = sshll.u32 %s162, 4
          %s172 = int_to_ptr.vmem [resolvable:$true] %s171
          %174 = dma.hbm_to_vmem [thread:$0]  %s170, 32, %s172, %s159
        $region24: #{tpu_custom_call.1} parent=15 // pred_fallthru
          _
      $region16: #{tpu_custom_call.1} parent=5 // pred_fallthru
        _
      %p175 = scmp.le.s32.totalorder 1, %s17
      %p176 = scmp.lt.s32.totalorder %s17, 3
      %p177 = pnand %p175, %p176
      %p178 = pneg %p177
      // Predicated region
      $region25: #{tpu_custom_call.1} parent=5 // pred_check
        _
      $region26: #{tpu_custom_call.1} parent=5 // pred_check_branch
        %180 = sbr.rel (%p177) target = $region28
      $region27: #{tpu_custom_call.1} parent=5 // pred_region
        %s181 = ssub.s32 %s17, 1
        %s182 = sand.u32 %s44, 1
        %s183 = scalar_lea.sflag [#allocation3], %s182
        %s184 = sand.u32 %s44, 1
        %s185 = smul.addr %s184, 4
        %s186 = scalar_lea.vmem [#allocation2], %s185
        // Predicated region
        $region29: #{tpu_custom_call.1} parent=27 // pred_check
          %p187 = pneg %p57
        $region30: #{tpu_custom_call.1} parent=27 // pred_check_branch
          %189 = sbr.rel (%p187) target = $region32
        $region31: #{tpu_custom_call.1} parent=27 // pred_region
          %191 = dma.done %s183, 64
        $region32: #{tpu_custom_call.1} parent=27 // pred_fallthru
          _
        %s192 = sand.u32 %s72, 1
        %s193 = scalar_lea.sflag [#allocation6], %s192
        %s194 = sand.u32 %s72, 1
        %s195 = smul.addr %s194, 2
        %s196 = scalar_lea.vmem [#allocation5], %s195
        // Predicated region
        $region33: #{tpu_custom_call.1} parent=27 // pred_check
          %p197 = pneg %p85
        $region34: #{tpu_custom_call.1} parent=27 // pred_check_branch
          %199 = sbr.rel (%p197) target = $region36
        $region35: #{tpu_custom_call.1} parent=27 // pred_region
          %201 = dma.done %s193, 32
        $region36: #{tpu_custom_call.1} parent=27 // pred_fallthru
          _
        %s202 = sand.u32 %s44, 1
        %s203 = scalar_lea.sflag [#allocation3], %s202
        %s204 = sand.u32 %s44, 1
        %s205 = smul.addr %s204, 4
        %s206 = scalar_lea.vmem [#allocation2], %s205
        %p207 = pneg %p57
        %p208 = pneg %p54
        %s209 = sand.u32 %s72, 1
        %s210 = scalar_lea.sflag [#allocation6], %s209
        %s211 = sand.u32 %s72, 1
        %s212 = smul.addr %s211, 2
        %s213 = scalar_lea.vmem [#allocation5], %s212
        %p214 = pneg %p85
        %p215 = pneg %p82
        %p216 = pneg %p113
        %p217 = pneg %p110
        %s218 = sand.u32 %s100, 1
        %s219 = scalar_lea.sflag [#allocation4], %s218
        %s220 = sand.u32 %s100, 1
        %s221 = scalar_lea.vmem [#allocation7], %s220
        %v222 = vld [vmem:[%s196] sm:$0x3]
        %v223 = vld [vmem:[%s186] sm:$0x3]
        %s224 = scalar_lea.vmem %s186, 2 [#allocation2]
        %v225 = vld [vmem:[%s224] sm:$0x3]
        %vm226 = vcmp.eq.s32.totalorder %v222, 0
        %v227 = vsel %vm226, %v223, %v225
        %v228 = vsel %vm226, %v225, %v223
        %v229 = vsub.f32 %v228, %v227
        %v230 = vand.u32 2147483647, %v229
        %v231 = vsub.f32 0.0, %v230
        %v232 = vmul.f32 %v231, 1.442695
        %v233 = vpow.pop %v232
        %v234 = vmax.f32 %v229, 0.0
        %v235 = vadd.f32 %v233, 1.0
        %v236 = vlog2.pop %v235
        %v237 = vmul.f32 %v236, 0.6931472
        %v238 = vadd.f32 %v234, %v237
        %v239 = vsub.f32 0.0, %v238
        %vm240 = vcmp.ge.f32.partialorder %v229, 0.0
        %v241 = vsel %vm240, %v233, 1.0
        %v242 = vrcp.pop %v235
        %v243 = vmul.f32 %v235, %v242
        %v244 = vsub.f32 1.0, %v243
        %v245 = vmul.f32 %v242, %v244
        %v246 = vadd.f32 %v242, %v245
        %vm247 = vweird.f32 %v235
        %vm248 = vweird.f32 %v242
        %vm249 = vmor %vm247, %vm248
        %v250 = vsel %vm249, %v242, %v246
        %v251 = vand.u32 2147483647, %v235
        %vm252 = vcmp.eq.f32.partialorder %v251, 8.507059e+37
        %v253 = vand.u32 %v235, 2147483648
        %v254 = vor.u32 1.1754944e-38, %v253
        %v255 = vsel %vm252, %v254, %v250
        %v256 = vmul.f32 %v241, %v255
        %v257 = vsel %vm226, 0.25, 0.75
        %v258 = vmul.f32 %v239, %v257
        %v259 = vsub.f32 1.0, %v256
        %v260 = vmul.f32 %v259, %v259
        %v261 = vmul.f32 %v260, %v258
        %v262 = vsub.f32 0.0, %v261
        %vm263 = vcmask 1041408
        %v264 = vsel %vm263, %v262, 0.0
        %v265 = vrot.slane %v264, 4
        %v266 = vadd.f32 %v264, %v265
        %v267 = vrot.slane %v266, 2
        %v268 = vadd.f32 %v266, %v267
        %v269 = vrot.slane %v268, 1
        %v270 = vadd.f32 %v268, %v269
        %271 = vst [vmem:[%s221] sm:$0x1] %v270
        %s272 = sand.u32 %s100, 1
        %s273 = scalar_lea.sflag [#allocation4], %s272
        %s274 = sand.u32 %s100, 1
        %s275 = scalar_lea.vmem [#allocation7], %s274
        // Predicated region
        $region37: #{tpu_custom_call.1} parent=27 // pred_check
          %p276 = pneg %p110
        $region38: #{tpu_custom_call.1} parent=27 // pred_check_branch
          %278 = sbr.rel (%p276) target = $region40
        $region39: #{tpu_custom_call.1} parent=27 // pred_region
          %280 = vsyncadd %s273, 0
          %s281 = sadd.s32 %s27, %s26
          %s282 = scalar_lea.hbm %s2, %s281
          %s284 = sshll.u32 %s275, 4
          %s285 = int_to_ptr.vmem [resolvable:$true] %s284
          %s286 = sshll.u32 %s282, 4
          %s287 = int_to_ptr.hbm [resolvable:$true] %s286
          %289 = dma.vmem_to_hbm [thread:$0]  %s285, 16, %s287, %s273
        $region40: #{tpu_custom_call.1} parent=27 // pred_fallthru
          _
      $region28: #{tpu_custom_call.1} parent=5 // pred_fallthru
        _
      %p290 = scmp.le.s32.totalorder 2, %s17
      // Predicated region
      $region41: #{tpu_custom_call.1} parent=5 // pred_check
        %p291 = pneg %p290
      $region42: #{tpu_custom_call.1} parent=5 // pred_check_branch
        %293 = sbr.rel (%p291) target = $region44
      $region43: #{tpu_custom_call.1} parent=5 // pred_region
        %s294 = ssub.s32 %s17, 2
        // Predicated region
        $region45: #{tpu_custom_call.1} parent=43 // pred_check
          %p295 = pneg %p116
        $region46: #{tpu_custom_call.1} parent=43 // pred_check_branch
          %297 = sbr.rel (%p295) target = $region48
        $region47: #{tpu_custom_call.1} parent=43 // pred_region
          %s298 = sand.u32 %s101, 1
          %s299 = scalar_lea.sflag [#allocation4], %s298
          %s300 = sand.u32 %s101, 1
          %s301 = scalar_lea.vmem [#allocation7], %s300
          %303 = dma.done %s299, 16
        $region48: #{tpu_custom_call.1} parent=43 // pred_fallthru
          _
      $region44: #{tpu_custom_call.1} parent=5 // pred_fallthru
        _
    $region6: #{tpu_custom_call.1} parent=1 // loop_footer
      %s21 = sadd.s32 1, %s17
    $region7: #{tpu_custom_call.1} parent=1 // loop_footer_branch
      %16 = sbr.rel target = $region3
    $region8: #{tpu_custom_call.1} parent=1 // loop_exit
      _
    %304 = vsyncpa [#allocation3], 1
    %s305 = scalar_lea.sflag [#allocation3], 1
    %306 = vsyncpa %s305, 1
    %307 = vsyncpa [#allocation6], 1
    %s308 = scalar_lea.sflag [#allocation6], 1
    %309 = vsyncpa %s308, 1
    %310 = vsyncpa [#allocation4], 1
    %s311 = scalar_lea.sflag [#allocation4], 1
    %312 = vsyncpa %s311, 1

</llo_original>
